<compile_context>
chip_gen: v6e
topology: v6e:2x2x1
jax: 0.10.0
libtpu: 0.0.40
codegen_flags: <defaults>
</compile_context>

<pallas_src>
import functools

import jax
import jax.numpy as jnp
from jax.experimental import pallas as pl
from jax.experimental.pallas import tpu as pltpu


# -----------------------------------------------------------------------------------------
# Kernels
# -----------------------------------------------------------------------------------------
def _adapter_fused_kernel(pooled_ref, w_combo_ref, w2_ref, o_ref, *, d_out):
    """One wide matmul [tb,Dp]x[Dp,Do+Dh] -> split -> ReLU -> small [tb,Dh]x[Dh,Do] -> +residual."""
    z = jnp.dot(pooled_ref[...], w_combo_ref[...],
                preferred_element_type=jnp.float32)                  # [tb, Do + Dh_pad] f32
    feats = z[:, :d_out]                                             # encode_image features
    h = jnp.maximum(z[:, d_out:], 0.0)                               # relu(feats @ W1)  (folded)
    a = jnp.maximum(jnp.dot(h.astype(jnp.bfloat16), w2_ref[...],
                            preferred_element_type=jnp.float32), 0.0)  # relu(h @ W2)
    o_ref[...] = (a + feats).astype(o_ref.dtype)


def _features_kernel(pooled_ref, w_fused_ref, o_ref):
    """zeroshot=True path: just the (folded) backbone projection."""
    o_ref[...] = jnp.dot(pooled_ref[...], w_fused_ref[...],
                         preferred_element_type=jnp.float32).astype(o_ref.dtype)


# -----------------------------------------------------------------------------------------
# Glue: patchify NCHW images and mean-pool over patches (plain JAX, fused by XLA).
# -----------------------------------------------------------------------------------------
def patchify_and_pool(images, patch_size):
    B, C, H, W = images.shape
    ph, pw = H // patch_size, W // patch_size
    x = images.reshape(B, C, ph, patch_size, pw, patch_size)
    x = jnp.transpose(x, (0, 2, 4, 1, 3, 5))                         # [B, ph, pw, C, ps, ps]
    x = x.reshape(B, ph * pw, C * patch_size * patch_size)           # [B, P, Dp]
    return jnp.mean(x.astype(jnp.float32), axis=1)                   # [B, Dp] f32


def _vmem_limit(block_bytes):
    # double-buffered blocks + slack for output/scratch; capped under v7x's 64 MiB physical VMEM.
    need = 2 * sum(block_bytes) + (4 << 20)
    return int(min(max(need, 8 << 20), 60 << 20))


# -----------------------------------------------------------------------------------------
# ImageEncoder forward: encode_image -> adapter(features) + features   (or features if zeroshot)
# -----------------------------------------------------------------------------------------
def image_encoder_forward(images, params, patch_size, *, zeroshot=False, tb=None):
    pooled = patchify_and_pool(images, patch_size).astype(jnp.bfloat16)   # [B, Dp] bf16
    B, Dp = pooled.shape

    w_embed = params["w_embed"].astype(jnp.float32)                        # [Dp, W]
    w_proj = params["w_proj"].astype(jnp.float32)                          # [W, Do]
    Do = w_proj.shape[1]

    # Exact fold (purely linear chain, no bias/nonlinearity in between).
    w_fused = w_embed @ w_proj                                             # [Dp, Do] f32

    # Batch tile: fill the MXU M dimension; single grid step for small demo batches.
    if tb is None:
        tb = B if B <= 256 else 256
    tb = min(tb, B)
    assert B % tb == 0, "batch must be divisible by the batch tile"
    assert tb == B or tb % 8 == 0, "partial batch tiles must be a multiple of 8"
    grid = (B // tb,)

    out_shape = jax.ShapeDtypeStruct((B, Do), jnp.float32)
    pooled_spec = pl.BlockSpec((tb, Dp), lambda i: (i, 0))
    out_spec = pl.BlockSpec((tb, Do), lambda i: (i, 0))

    if zeroshot:
        blocks = [tb * Dp * 2, Dp * Do * 2, tb * Do * 4]
        return pl.pallas_call(
            _features_kernel,
            out_shape=out_shape,
            grid=grid,
            in_specs=[pooled_spec,
                      pl.BlockSpec((Dp, Do), lambda i: (0, 0))],
            out_specs=out_spec,
            compiler_params=pltpu.CompilerParams(
                dimension_semantics=("parallel",),
                vmem_limit_bytes=_vmem_limit(blocks)),
        )(pooled, w_fused.astype(jnp.bfloat16))

    # ----- Adapter weight prep: zero-pad hidden dim to 128 lanes and fold the down-proj. -----
    w1 = params["adapter_w1"].astype(jnp.float32)                          # [Do, Dh]
    w2 = params["adapter_w2"].astype(jnp.float32)                          # [Dh, Do]
    Dh = w1.shape[1]
    Dh_pad = max(128, ((Dh + 127) // 128) * 128)
    w1p = jnp.zeros((Do, Dh_pad), jnp.float32).at[:, :Dh].set(w1)          # exact: zero cols
    w2p = jnp.zeros((Dh_pad, Do), jnp.float32).at[:Dh, :].set(w2)          # exact: zero rows

    # relu(feats @ W1) == relu(pooled @ (W_fused @ W1))  ->  fold into one wide matmul.
    w_combo = jnp.concatenate([w_fused, w_fused @ w1p], axis=1)            # [Dp, Do + Dh_pad]
    Dn = Do + Dh_pad

    blocks = [tb * Dp * 2, Dp * Dn * 2, Dh_pad * Do * 2, tb * Do * 4]
    kernel = functools.partial(_adapter_fused_kernel, d_out=Do)
    return pl.pallas_call(
        kernel,
        out_shape=out_shape,
        grid=grid,
        in_specs=[pooled_spec,
                  pl.BlockSpec((Dp, Dn), lambda i: (0, 0)),
                  pl.BlockSpec((Dh_pad, Do), lambda i: (0, 0))],
        out_specs=out_spec,
        compiler_params=pltpu.CompilerParams(
            dimension_semantics=("parallel",),
            vmem_limit_bytes=_vmem_limit(blocks)),
    )(pooled, w_combo.astype(jnp.bfloat16), w2p.astype(jnp.bfloat16))


if __name__ == "__main__":
    # Small, module-consistent shapes (CLIP-style RGB images, ViT-ish patch size).
    B, C, H, W = 16, 3, 32, 32     # NCHW images (PyTorch conv layout)
    PATCH = 16                     # => P = 4 patches, Dp = 3*16*16 = 768 (lane-aligned)
    WIDTH = 128                    # visual backbone width (small but lane-dense)
    OUTPUT_DIM = 128               # self.output_dim — multiple of 128 for unmasked stores
    REDUCTION = 4                  # Adapter reduction

    key = jax.random.PRNGKey(0)
    k_img, k_embed, k_proj, k_w1, k_w2 = jax.random.split(key, 5)

    images = jax.random.normal(k_img, (B, C, H, W), dtype=jnp.float32)

    Dp = C * PATCH * PATCH
    params = {
        # encode_image stub weights
        "w_embed": jax.random.normal(k_embed, (Dp, WIDTH), jnp.float32) * (Dp ** -0.5),
        "w_proj": jax.random.normal(k_proj, (WIDTH, OUTPUT_DIM), jnp.float32) * (WIDTH ** -0.5),
        # Adapter: Linear(D, D//4, bias=False), Linear(D//4, D, bias=False)
        "adapter_w1": jax.random.normal(
            k_w1, (OUTPUT_DIM, OUTPUT_DIM // REDUCTION), jnp.float32) * (OUTPUT_DIM ** -0.5),
        "adapter_w2": jax.random.normal(
            k_w2, (OUTPUT_DIM // REDUCTION, OUTPUT_DIM), jnp.float32)
            * ((OUTPUT_DIM // REDUCTION) ** -0.5),
    }

    out = image_encoder_forward(images, params, PATCH, zeroshot=False)
    feats_only = image_encoder_forward(images, params, PATCH, zeroshot=True)
    jax.block_until_ready(out)
    jax.block_until_ready(feats_only)

    # f32 reference in the ORIGINAL op order (patch-embed matmul -> mean -> proj -> adapter
    # + residual). Validates the pool-before-matmul commute and all weight foldings;
    # tolerance accounts for bf16 operands with f32 accumulation.
    x = images.reshape(B, C, H // PATCH, PATCH, W // PATCH, PATCH)
    x = jnp.transpose(x, (0, 2, 4, 1, 3, 5)).reshape(B, -1, Dp)
    feats_ref = jnp.mean(x @ params["w_embed"], axis=1) @ params["w_proj"]
    h_ref = jnp.maximum(feats_ref @ params["adapter_w1"], 0.0)
    a_ref = jnp.maximum(h_ref @ params["adapter_w2"], 0.0)
    out_ref = a_ref + feats_ref

    assert out.shape == (B, OUTPUT_DIM)
    assert feats_only.shape == (B, OUTPUT_DIM)
    err_full = float(jnp.max(jnp.abs(out - out_ref)))
    err_feat = float(jnp.max(jnp.abs(feats_only - feats_ref)))
    assert jnp.allclose(out, out_ref, atol=7e-2, rtol=7e-2), f"max abs err = {err_full}"
    assert jnp.allclose(feats_only, feats_ref, atol=7e-2, rtol=7e-2), f"max abs err = {err_feat}"

    print("KERNEL_OK")
</pallas_src>

<mosaic_0001>
module attributes {stable_mosaic.version = 11 : i64} {
  func.func @_adapter_fused_kernel(%arg0: i32, %arg1: memref<16x768xbf16, #tpu.memory_space<vmem>>, %arg2: memref<768x256xbf16, #tpu.memory_space<vmem>>, %arg3: memref<128x128xbf16, #tpu.memory_space<vmem>>, %arg4: memref<16x128xf32, #tpu.memory_space<vmem>>) attributes {dimension_semantics = [#tpu.dimension_semantics<parallel>], iteration_bounds = array<i64: 1>, scalar_prefetch = 0 : i64, scratch_operands = 0 : i64, tpu.core_type = #tpu.core_type<tc>, window_params = [{transform_indices = @transform_0, window_bounds = array<i64: 16, 768>}, {pipeline_mode = #tpu.pipeline_mode<synchronous>, transform_indices = @transform_1, window_bounds = array<i64: 768, 256>}, {pipeline_mode = #tpu.pipeline_mode<synchronous>, transform_indices = @transform_2, window_bounds = array<i64: 128, 128>}, {transform_indices = @transform_3, window_bounds = array<i64: 16, 128>}]} {
    %c0 = arith.constant 0 : index
    %c0_0 = arith.constant 0 : index
    %0 = vector.load %arg1[%c0, %c0_0] : memref<16x768xbf16, #tpu.memory_space<vmem>>, vector<16x768xbf16>
    %c0_1 = arith.constant 0 : index
    %c0_2 = arith.constant 0 : index
    %1 = vector.load %arg2[%c0_1, %c0_2] : memref<768x256xbf16, #tpu.memory_space<vmem>>, vector<768x256xbf16>
    %cst = arith.constant dense<0.000000e+00> : vector<16x256xf32>
    %2 = tpu.matmul %0, %1, %cst {dimension_numbers = #tpu.dot_dimension_numbers<[1], [0], [0], [1], [0, 0, 1, 1], [], []>} : vector<16x768xbf16>, vector<768x256xbf16>, vector<16x256xf32> -> vector<16x256xf32>
    %3 = vector.extract_strided_slice %2 {offsets = [0, 0], sizes = [16, 128], strides = [1, 1]} : vector<16x256xf32> to vector<16x128xf32>
    %4 = vector.extract_strided_slice %2 {offsets = [0, 128], sizes = [16, 128], strides = [1, 1]} : vector<16x256xf32> to vector<16x128xf32>
    %cst_3 = arith.constant 0.000000e+00 : f32
    %5 = vector.broadcast %cst_3 : f32 to vector<16x128xf32>
    %6 = arith.maximumf %4, %5 : vector<16x128xf32>
    %7 = arith.truncf %6 : vector<16x128xf32> to vector<16x128xbf16>
    %c0_4 = arith.constant 0 : index
    %c0_5 = arith.constant 0 : index
    %8 = vector.load %arg3[%c0_4, %c0_5] : memref<128x128xbf16, #tpu.memory_space<vmem>>, vector<128x128xbf16>
    %cst_6 = arith.constant dense<0.000000e+00> : vector<16x128xf32>
    %9 = tpu.matmul %7, %8, %cst_6 {dimension_numbers = #tpu.dot_dimension_numbers<[1], [0], [0], [1], [0, 0, 1, 1], [], []>} : vector<16x128xbf16>, vector<128x128xbf16>, vector<16x128xf32> -> vector<16x128xf32>
    %cst_7 = arith.constant 0.000000e+00 : f32
    %10 = vector.broadcast %cst_7 : f32 to vector<16x128xf32>
    %11 = arith.maximumf %9, %10 : vector<16x128xf32>
    %12 = arith.addf %11, %3 : vector<16x128xf32>
    %c0_8 = arith.constant 0 : index
    %c0_9 = arith.constant 0 : index
    %13 = vector.load %arg4[%c0_8, %c0_9] : memref<16x128xf32, #tpu.memory_space<vmem>>, vector<16x128xf32>
    tpu.vector_store %arg4[%c0_8, %c0_9], %12 {strides = array<i32>} : memref<16x128xf32, #tpu.memory_space<vmem>>, vector<16x128xf32>,
    return
  }
  func.func @transform_0(%arg0: i32) -> (i32, i32) {
    %c0_i32 = arith.constant 0 : i32
    %c0_i32_0 = arith.constant 0 : i32
    return %arg0, %c0_i32 : i32, i32
  }
  func.func @transform_1(%arg0: i32) -> (i32, i32) {
    %c0_i32 = arith.constant 0 : i32
    %c0_i32_0 = arith.constant 0 : i32
    %c0_i32_1 = arith.constant 0 : i32
    return %c0_i32, %c0_i32_0 : i32, i32
  }
  func.func @transform_2(%arg0: i32) -> (i32, i32) {
    %c0_i32 = arith.constant 0 : i32
    %c0_i32_0 = arith.constant 0 : i32
    %c0_i32_1 = arith.constant 0 : i32
    return %c0_i32, %c0_i32_0 : i32, i32
  }
  func.func @transform_3(%arg0: i32) -> (i32, i32) {
    %c0_i32 = arith.constant 0 : i32
    %c0_i32_0 = arith.constant 0 : i32
    return %arg0, %c0_i32 : i32, i32
  }
}

</mosaic_0001>

<llo_original>
// kernel: tpu_custom_call.1
$region0: #{tpu_custom_call.1}
  #allocation0 [shape = 'u32[]', space=smem, size = 0x4, offset = 0x4, fixed_abs, tag = 'smem constant byte address 0x4 - core index']
  #allocation1 [shape = 'u32[144,128]{1,0:T(1,128)}', space=vmem, size = 0x12000, scoped, tag = 'internal scratch']
  %s0 = inlined_call_operand.hbm [shape: bf16[16,768], index: 0, kind: input, shape index: {}]
  %s1 = inlined_call_operand.hbm [shape: bf16[768,256], index: 1, kind: input, shape index: {}]
  %s2 = inlined_call_operand.hbm [shape: bf16[128,128], index: 2, kind: input, shape index: {}]
  %s3 = inlined_call_operand.hbm [shape: f32[16,128], index: 3, kind: output, shape index: {}]
  %s4 = sld [smem:[#allocation0]]
  $region34: #{tpu_custom_call.1} parent=0
    _
  %s6 = ssub.s32 1, %s4
  %s7 = scalar_select 0, %s6, %s4
  $region1: #{tpu_custom_call.1} parent=0
    #allocation2 [shape = 'u8[24576]{0}', space=vmem, size = 0x6000, scoped, tag = 'input window, operand 0, single buffered']
    #allocation3 [shape = 's32[1]{0}', space=sflag, size = 0x4, scoped, tag = 'scoped memory for tpu_custom_call.1']
    #allocation4 [shape = 's32[1]{0}', space=sflag, size = 0x4, scoped, tag = 'scoped memory for tpu_custom_call.1']
    #allocation5 [shape = 'u8[393216]{0}', space=vmem, size = 0x60000, scoped, tag = 'input window, operand 1, single buffered']
    #allocation6 [shape = 's32[1]{0}', space=sflag, size = 0x4, scoped, tag = 'scoped memory for tpu_custom_call.1']
    #allocation7 [shape = 'u8[32768]{0}', space=vmem, size = 0x8000, scoped, tag = 'input window, operand 2, single buffered']
    #allocation8 [shape = 'u8[8192]{0}', space=vmem, size = 0x2000, scoped, tag = 'output window, operand 0, single buffered']
    %8 = vsyncpa [#allocation3], 0
    %9 = vsyncpa [#allocation6], 0
    %10 = vsyncpa [#allocation4], 0
    // Predicated region
    $region2: #{tpu_custom_call.1} parent=1 // pred_check
      _
    $region3: #{tpu_custom_call.1} parent=1 // pred_check_branch
      %12 = sbr.rel (0) target = $region5
    $region4: #{tpu_custom_call.1} parent=1 // pred_region
      %s14 = ssub.s32 768, 768
      %15 = vsyncadd [#allocation3], %s14
      %s16 = sshll.u32 [#allocation2], 4
      %s17 = int_to_ptr.vmem [resolvable:$true] %s16
      %22 = dma.hbm_to_vmem [thread:$0]  %s0, 768, %s17, [#allocation3], 384, 384, 24
    $region5: #{tpu_custom_call.1} parent=1 // pred_fallthru
      _
    // Predicated region
    $region6: #{tpu_custom_call.1} parent=1 // pred_check
      _
    $region7: #{tpu_custom_call.1} parent=1 // pred_check_branch
      %24 = sbr.rel (0) target = $region9
    $region8: #{tpu_custom_call.1} parent=1 // pred_region
      %s26 = ssub.s32 12288, 12288
      %27 = vsyncadd [#allocation6], %s26
      %s28 = sshll.u32 [#allocation5], 4
      %s29 = int_to_ptr.vmem [resolvable:$true] %s28
      %34 = dma.hbm_to_vmem [thread:$0]  %s1, 12288, %s29, [#allocation6], 128, 128, 8
    $region9: #{tpu_custom_call.1} parent=1 // pred_fallthru
      _
    // Predicated region
    $region10: #{tpu_custom_call.1} parent=1 // pred_check
      _
    $region11: #{tpu_custom_call.1} parent=1 // pred_check_branch
      %36 = sbr.rel (0) target = $region13
    $region12: #{tpu_custom_call.1} parent=1 // pred_region
      %s38 = ssub.s32 1024, 1024
      %39 = vsyncadd [#allocation6], %s38
      %s40 = sshll.u32 [#allocation7], 4
      %s41 = int_to_ptr.vmem [resolvable:$true] %s40
      %46 = dma.hbm_to_vmem [thread:$0]  %s2, 1024, %s41, [#allocation6], 64, 64, 4
    $region13: #{tpu_custom_call.1} parent=1 // pred_fallthru
      _
    // Predicated region
    $region14: #{tpu_custom_call.1} parent=1 // pred_check
      _
    $region15: #{tpu_custom_call.1} parent=1 // pred_check_branch
      %48 = sbr.rel (0) target = $region17
    $region16: #{tpu_custom_call.1} parent=1 // pred_region
      %49 = dma.done [#allocation3], 768
    $region17: #{tpu_custom_call.1} parent=1 // pred_fallthru
      _
    // Predicated region
    $region18: #{tpu_custom_call.1} parent=1 // pred_check
      _
    $region19: #{tpu_custom_call.1} parent=1 // pred_check_branch
      %51 = sbr.rel (0) target = $region21
    $region20: #{tpu_custom_call.1} parent=1 // pred_region
      %52 = dma.done [#allocation6], 12288
    $region21: #{tpu_custom_call.1} parent=1 // pred_fallthru
      _
    // Predicated region
    $region22: #{tpu_custom_call.1} parent=1 // pred_check
      _
    $region23: #{tpu_custom_call.1} parent=1 // pred_check_branch
      %54 = sbr.rel (0) target = $region25
    $region24: #{tpu_custom_call.1} parent=1 // pred_region
      %55 = dma.done [#allocation6], 1024
    $region25: #{tpu_custom_call.1} parent=1 // pred_fallthru
      _
    %v57 = vld [vmem:[#allocation2] sm:$0xff]
    %v58 = vld [vmem:[#allocation2 + $0x8] sm:$0xff]
    %v59 = vld [vmem:[#allocation2 + $0x10] sm:$0xff]
    %v60 = vld [vmem:[#allocation2 + $0x18] sm:$0xff]
    %v61 = vld [vmem:[#allocation2 + $0x20] sm:$0xff]
    %v62 = vld [vmem:[#allocation2 + $0x28] sm:$0xff]
    %v63 = vld [vmem:[#allocation5] sm:$0xff]
    %v64 = vld [vmem:[#allocation5 + $0x8] sm:$0xff]
    %v65 = vld [vmem:[#allocation5 + $0x10] sm:$0xff]
    %v66 = vld [vmem:[#allocation5 + $0x18] sm:$0xff]
    %v67 = vld [vmem:[#allocation5 + $0x20] sm:$0xff]
    %v68 = vld [vmem:[#allocation5 + $0x28] sm:$0xff]
    %v69 = vld [vmem:[#allocation5 + $0x30] sm:$0xff]
    %v70 = vld [vmem:[#allocation5 + $0x38] sm:$0xff]
    %v71 = vld [vmem:[#allocation5 + $0x40] sm:$0xff]
    %v72 = vld [vmem:[#allocation5 + $0x48] sm:$0xff]
    %v73 = vld [vmem:[#allocation5 + $0x50] sm:$0xff]
    %v74 = vld [vmem:[#allocation5 + $0x58] sm:$0xff]
    %v75 = vld [vmem:[#allocation5 + $0x60] sm:$0xff]
    %v76 = vld [vmem:[#allocation5 + $0x68] sm:$0xff]
    %v77 = vld [vmem:[#allocation5 + $0x70] sm:$0xff]
    %v78 = vld [vmem:[#allocation5 + $0x78] sm:$0xff]
    %v79 = vld [vmem:[#allocation5 + $0x80] sm:$0xff]
    %v80 = vld [vmem:[#allocation5 + $0x88] sm:$0xff]
    %v81 = vld [vmem:[#allocation5 + $0x90] sm:$0xff]
    %v82 = vld [vmem:[#allocation5 + $0x98] sm:$0xff]
    %v83 = vld [vmem:[#allocation5 + $0xa0] sm:$0xff]
    %v84 = vld [vmem:[#allocation5 + $0xa8] sm:$0xff]
    %v85 = vld [vmem:[#allocation5 + $0xb0] sm:$0xff]
    %v86 = vld [vmem:[#allocation5 + $0xb8] sm:$0xff]
    %v87 = vld [vmem:[#allocation5 + $0xc0] sm:$0xff]
    %v88 = vld [vmem:[#allocation5 + $0xc8] sm:$0xff]
    %v89 = vld [vmem:[#allocation5 + $0xd0] sm:$0xff]
    %v90 = vld [vmem:[#allocation5 + $0xd8] sm:$0xff]
    %v91 = vld [vmem:[#allocation5 + $0xe0] sm:$0xff]
    %v92 = vld [vmem:[#allocation5 + $0xe8] sm:$0xff]
    %v93 = vld [vmem:[#allocation5 + $0xf0] sm:$0xff]
    %v94 = vld [vmem:[#allocation5 + $0xf8] sm:$0xff]
    %v95 = vld [vmem:[#allocation5 + $0x100] sm:$0xff]
    %v96 = vld [vmem:[#allocation5 + $0x108] sm:$0xff]
    %v97 = vld [vmem:[#allocation5 + $0x110] sm:$0xff]
    %v98 = vld [vmem:[#allocation5 + $0x118] sm:$0xff]
    %v99 = vld [vmem:[#allocation5 + $0x120] sm:$0xff]
    %v100 = vld [vmem:[#allocation5 + $0x128] sm:$0xff]
    %v101 = vld [vmem:[#allocation5 + $0x130] sm:$0xff]
    %v102 = vld [vmem:[#allocation5 + $0x138] sm:$0xff]
    %v103 = vld [vmem:[#allocation5 + $0x140] sm:$0xff]
    %v104 = vld [vmem:[#allocation5 + $0x148] sm:$0xff]
    %v105 = vld [vmem:[#allocation5 + $0x150] sm:$0xff]
    %v106 = vld [vmem:[#allocation5 + $0x158] sm:$0xff]
    %v107 = vld [vmem:[#allocation5 + $0x160] sm:$0xff]
    %v108 = vld [vmem:[#allocation5 + $0x168] sm:$0xff]
    %v109 = vld [vmem:[#allocation5 + $0x170] sm:$0xff]
    %v110 = vld [vmem:[#allocation5 + $0x178] sm:$0xff]
    %v111 = vld [vmem:[#allocation5 + $0x180] sm:$0xff]
    %v112 = vld [vmem:[#allocation5 + $0x188] sm:$0xff]
    %v113 = vld [vmem:[#allocation5 + $0x190] sm:$0xff]
    %v114 = vld [vmem:[#allocation5 + $0x198] sm:$0xff]
    %v115 = vld [vmem:[#allocation5 + $0x1a0] sm:$0xff]
    %v116 = vld [vmem:[#allocation5 + $0x1a8] sm:$0xff]
    %v117 = vld [vmem:[#allocation5 + $0x1b0] sm:$0xff]
    %v118 = vld [vmem:[#allocation5 + $0x1b8] sm:$0xff]
    %v119 = vld [vmem:[#allocation5 + $0x1c0] sm:$0xff]
    %v120 = vld [vmem:[#allocation5 + $0x1c8] sm:$0xff]
    %v121 = vld [vmem:[#allocation5 + $0x1d0] sm:$0xff]
    %v122 = vld [vmem:[#allocation5 + $0x1d8] sm:$0xff]
    %v123 = vld [vmem:[#allocation5 + $0x1e0] sm:$0xff]
    %v124 = vld [vmem:[#allocation5 + $0x1e8] sm:$0xff]
    %v125 = vld [vmem:[#allocation5 + $0x1f0] sm:$0xff]
    %v126 = vld [vmem:[#allocation5 + $0x1f8] sm:$0xff]
    %v127 = vld [vmem:[#allocation5 + $0x200] sm:$0xff]
    %v128 = vld [vmem:[#allocation5 + $0x208] sm:$0xff]
    %v129 = vld [vmem:[#allocation5 + $0x210] sm:$0xff]
    %v130 = vld [vmem:[#allocation5 + $0x218] sm:$0xff]
    %v131 = vld [vmem:[#allocation5 + $0x220] sm:$0xff]
    %v132 = vld [vmem:[#allocation5 + $0x228] sm:$0xff]
    %v133 = vld [vmem:[#allocation5 + $0x230] sm:$0xff]
    %v134 = vld [vmem:[#allocation5 + $0x238] sm:$0xff]
    %v135 = vld [vmem:[#allocation5 + $0x240] sm:$0xff]
    %v136 = vld [vmem:[#allocation5 + $0x248] sm:$0xff]
    %v137 = vld [vmem:[#allocation5 + $0x250] sm:$0xff]
    %v138 = vld [vmem:[#allocation5 + $0x258] sm:$0xff]
    %v139 = vld [vmem:[#allocation5 + $0x260] sm:$0xff]
    %v140 = vld [vmem:[#allocation5 + $0x268] sm:$0xff]
    %v141 = vld [vmem:[#allocation5 + $0x270] sm:$0xff]
    %v142 = vld [vmem:[#allocation5 + $0x278] sm:$0xff]
    %v143 = vld [vmem:[#allocation5 + $0x280] sm:$0xff]
    %v144 = vld [vmem:[#allocation5 + $0x288] sm:$0xff]
    %v145 = vld [vmem:[#allocation5 + $0x290] sm:$0xff]
    %v146 = vld [vmem:[#allocation5 + $0x298] sm:$0xff]
    %v147 = vld [vmem:[#allocation5 + $0x2a0] sm:$0xff]
    %v148 = vld [vmem:[#allocation5 + $0x2a8] sm:$0xff]
    %v149 = vld [vmem:[#allocation5 + $0x2b0] sm:$0xff]
    %v150 = vld [vmem:[#allocation5 + $0x2b8] sm:$0xff]
    %v151 = vld [vmem:[#allocation5 + $0x2c0] sm:$0xff]
    %v152 = vld [vmem:[#allocation5 + $0x2c8] sm:$0xff]
    %v153 = vld [vmem:[#allocation5 + $0x2d0] sm:$0xff]
    %v154 = vld [vmem:[#allocation5 + $0x2d8] sm:$0xff]
    %v155 = vld [vmem:[#allocation5 + $0x2e0] sm:$0xff]
    %v156 = vld [vmem:[#allocation5 + $0x2e8] sm:$0xff]
    %v157 = vld [vmem:[#allocation5 + $0x2f0] sm:$0xff]
    %v158 = vld [vmem:[#allocation5 + $0x2f8] sm:$0xff]
    %v165 = vunpack.c.l.b16 %v57
    %v166 = vunpack.c.h.b16 %v57
    %v167 = vunpack.c.l.b16 %v58
    %v168 = vunpack.c.h.b16 %v58
    %v169 = vunpack.c.l.b16 %v59
    %v170 = vunpack.c.h.b16 %v59
    %v171 = vunpack.c.l.b16 %v60
    %v172 = vunpack.c.h.b16 %v60
    %v173 = vunpack.c.l.b16 %v61
    %v174 = vunpack.c.h.b16 %v61
    %v175 = vunpack.c.l.b16 %v62
    %v176 = vunpack.c.h.b16 %v62
    %v177 = vpack.c.b16 %v171, %v165
    %v178 = vpack.c.b16 %v172, %v166
    %v179 = vpack.c.b16 %v173, %v167
    %v180 = vpack.c.b16 %v174, %v168
    %v181 = vpack.c.b16 %v175, %v169
    %v182 = vpack.c.b16 %v176, %v170
    %v285 = vunpack.c.l.b16 %v63
    %v286 = vunpack.c.h.b16 %v63
    %v287 = vunpack.c.l.b16 %v64
    %v288 = vunpack.c.h.b16 %v64
    %v289 = vunpack.c.l.b16 %v65
    %v290 = vunpack.c.h.b16 %v65
    %v291 = vunpack.c.l.b16 %v66
    %v292 = vunpack.c.h.b16 %v66
    %v293 = vunpack.c.l.b16 %v67
    %v294 = vunpack.c.h.b16 %v67
    %v295 = vunpack.c.l.b16 %v68
    %v296 = vunpack.c.h.b16 %v68
    %v297 = vunpack.c.l.b16 %v69
    %v298 = vunpack.c.h.b16 %v69
    %v299 = vunpack.c.l.b16 %v70
    %v300 = vunpack.c.h.b16 %v70
    %v301 = vunpack.c.l.b16 %v71
    %v302 = vunpack.c.h.b16 %v71
    %v303 = vunpack.c.l.b16 %v72
    %v304 = vunpack.c.h.b16 %v72
    %v305 = vunpack.c.l.b16 %v73
    %v306 = vunpack.c.h.b16 %v73
    %v307 = vunpack.c.l.b16 %v74
    %v308 = vunpack.c.h.b16 %v74
    %v309 = vunpack.c.l.b16 %v75
    %v310 = vunpack.c.h.b16 %v75
    %v311 = vunpack.c.l.b16 %v76
    %v312 = vunpack.c.h.b16 %v76
    %v313 = vunpack.c.l.b16 %v77
    %v314 = vunpack.c.h.b16 %v77
    %v315 = vunpack.c.l.b16 %v78
    %v316 = vunpack.c.h.b16 %v78
    %v317 = vunpack.c.l.b16 %v79
    %v318 = vunpack.c.h.b16 %v79
    %v319 = vunpack.c.l.b16 %v80
    %v320 = vunpack.c.h.b16 %v80
    %v321 = vunpack.c.l.b16 %v81
    %v322 = vunpack.c.h.b16 %v81
    %v323 = vunpack.c.l.b16 %v82
    %v324 = vunpack.c.h.b16 %v82
    %v325 = vunpack.c.l.b16 %v83
    %v326 = vunpack.c.h.b16 %v83
    %v327 = vunpack.c.l.b16 %v84
    %v328 = vunpack.c.h.b16 %v84
    %v329 = vunpack.c.l.b16 %v85
    %v330 = vunpack.c.h.b16 %v85
    %v331 = vunpack.c.l.b16 %v86
    %v332 = vunpack.c.h.b16 %v86
    %v333 = vunpack.c.l.b16 %v87
    %v334 = vunpack.c.h.b16 %v87
    %v335 = vunpack.c.l.b16 %v88
    %v336 = vunpack.c.h.b16 %v88
    %v337 = vunpack.c.l.b16 %v89
    %v338 = vunpack.c.h.b16 %v89
    %v339 = vunpack.c.l.b16 %v90
    %v340 = vunpack.c.h.b16 %v90
    %v341 = vunpack.c.l.b16 %v91
    %v342 = vunpack.c.h.b16 %v91
    %v343 = vunpack.c.l.b16 %v92
    %v344 = vunpack.c.h.b16 %v92
    %v345 = vunpack.c.l.b16 %v93
    %v346 = vunpack.c.h.b16 %v93
    %v347 = vunpack.c.l.b16 %v94
    %v348 = vunpack.c.h.b16 %v94
    %v349 = vunpack.c.l.b16 %v95
    %v350 = vunpack.c.h.b16 %v95
    %v351 = vunpack.c.l.b16 %v96
    %v352 = vunpack.c.h.b16 %v96
    %v353 = vunpack.c.l.b16 %v97
    %v354 = vunpack.c.h.b16 %v97
    %v355 = vunpack.c.l.b16 %v98
    %v356 = vunpack.c.h.b16 %v98
    %v357 = vunpack.c.l.b16 %v99
    %v358 = vunpack.c.h.b16 %v99
    %v359 = vunpack.c.l.b16 %v100
    %v360 = vunpack.c.h.b16 %v100
    %v361 = vunpack.c.l.b16 %v101
    %v362 = vunpack.c.h.b16 %v101
    %v363 = vunpack.c.l.b16 %v102
    %v364 = vunpack.c.h.b16 %v102
    %v365 = vunpack.c.l.b16 %v103
    %v366 = vunpack.c.h.b16 %v103
    %v367 = vunpack.c.l.b16 %v104
    %v368 = vunpack.c.h.b16 %v104
    %v369 = vunpack.c.l.b16 %v105
    %v370 = vunpack.c.h.b16 %v105
    %v371 = vunpack.c.l.b16 %v106
    %v372 = vunpack.c.h.b16 %v106
    %v373 = vunpack.c.l.b16 %v107
    %v374 = vunpack.c.h.b16 %v107
    %v375 = vunpack.c.l.b16 %v108
    %v376 = vunpack.c.h.b16 %v108
    %v377 = vunpack.c.l.b16 %v109
    %v378 = vunpack.c.h.b16 %v109
    %v379 = vunpack.c.l.b16 %v110
    %v380 = vunpack.c.h.b16 %v110
    %v381 = vunpack.c.l.b16 %v111
    %v382 = vunpack.c.h.b16 %v111
    %v383 = vunpack.c.l.b16 %v112
    %v384 = vunpack.c.h.b16 %v112
    %v385 = vunpack.c.l.b16 %v113
    %v386 = vunpack.c.h.b16 %v113
    %v387 = vunpack.c.l.b16 %v114
    %v388 = vunpack.c.h.b16 %v114
    %v389 = vunpack.c.l.b16 %v115
    %v390 = vunpack.c.h.b16 %v115
    %v391 = vunpack.c.l.b16 %v116
    %v392 = vunpack.c.h.b16 %v116
    %v393 = vunpack.c.l.b16 %v117
    %v394 = vunpack.c.h.b16 %v117
    %v395 = vunpack.c.l.b16 %v118
    %v396 = vunpack.c.h.b16 %v118
    %v397 = vunpack.c.l.b16 %v119
    %v398 = vunpack.c.h.b16 %v119
    %v399 = vunpack.c.l.b16 %v120
    %v400 = vunpack.c.h.b16 %v120
    %v401 = vunpack.c.l.b16 %v121
    %v402 = vunpack.c.h.b16 %v121
    %v403 = vunpack.c.l.b16 %v122
    %v404 = vunpack.c.h.b16 %v122
    %v405 = vunpack.c.l.b16 %v123
    %v406 = vunpack.c.h.b16 %v123
    %v407 = vunpack.c.l.b16 %v124
    %v408 = vunpack.c.h.b16 %v124
    %v409 = vunpack.c.l.b16 %v125
    %v410 = vunpack.c.h.b16 %v125
    %v411 = vunpack.c.l.b16 %v126
    %v412 = vunpack.c.h.b16 %v126
    %v413 = vunpack.c.l.b16 %v127
    %v414 = vunpack.c.h.b16 %v127
    %v415 = vunpack.c.l.b16 %v128
    %v416 = vunpack.c.h.b16 %v128
    %v417 = vunpack.c.l.b16 %v129
    %v418 = vunpack.c.h.b16 %v129
    %v419 = vunpack.c.l.b16 %v130
    %v420 = vunpack.c.h.b16 %v130
    %v421 = vunpack.c.l.b16 %v131
    %v422 = vunpack.c.h.b16 %v131
    %v423 = vunpack.c.l.b16 %v132
    %v424 = vunpack.c.h.b16 %v132
    %v425 = vunpack.c.l.b16 %v133
    %v426 = vunpack.c.h.b16 %v133
    %v427 = vunpack.c.l.b16 %v134
    %v428 = vunpack.c.h.b16 %v134
    %v429 = vunpack.c.l.b16 %v135
    %v430 = vunpack.c.h.b16 %v135
    %v431 = vunpack.c.l.b16 %v136
    %v432 = vunpack.c.h.b16 %v136
    %v433 = vunpack.c.l.b16 %v137
    %v434 = vunpack.c.h.b16 %v137
    %v435 = vunpack.c.l.b16 %v138
    %v436 = vunpack.c.h.b16 %v138
    %v437 = vunpack.c.l.b16 %v139
    %v438 = vunpack.c.h.b16 %v139
    %v439 = vunpack.c.l.b16 %v140
    %v440 = vunpack.c.h.b16 %v140
    %v441 = vunpack.c.l.b16 %v141
    %v442 = vunpack.c.h.b16 %v141
    %v443 = vunpack.c.l.b16 %v142
    %v444 = vunpack.c.h.b16 %v142
    %v445 = vunpack.c.l.b16 %v143
    %v446 = vunpack.c.h.b16 %v143
    %v447 = vunpack.c.l.b16 %v144
    %v448 = vunpack.c.h.b16 %v144
    %v449 = vunpack.c.l.b16 %v145
    %v450 = vunpack.c.h.b16 %v145
    %v451 = vunpack.c.l.b16 %v146
    %v452 = vunpack.c.h.b16 %v146
    %v453 = vunpack.c.l.b16 %v147
    %v454 = vunpack.c.h.b16 %v147
    %v455 = vunpack.c.l.b16 %v148
    %v456 = vunpack.c.h.b16 %v148
    %v457 = vunpack.c.l.b16 %v149
    %v458 = vunpack.c.h.b16 %v149
    %v459 = vunpack.c.l.b16 %v150
    %v460 = vunpack.c.h.b16 %v150
    %v461 = vunpack.c.l.b16 %v151
    %v462 = vunpack.c.h.b16 %v151
    %v463 = vunpack.c.l.b16 %v152
    %v464 = vunpack.c.h.b16 %v152
    %v465 = vunpack.c.l.b16 %v153
    %v466 = vunpack.c.h.b16 %v153
    %v467 = vunpack.c.l.b16 %v154
    %v468 = vunpack.c.h.b16 %v154
    %v469 = vunpack.c.l.b16 %v155
    %v470 = vunpack.c.h.b16 %v155
    %v471 = vunpack.c.l.b16 %v156
    %v472 = vunpack.c.h.b16 %v156
    %v473 = vunpack.c.l.b16 %v157
    %v474 = vunpack.c.h.b16 %v157
    %v475 = vunpack.c.l.b16 %v158
    %v476 = vunpack.c.h.b16 %v158
    %v477 = vpack.c.b16 %v287, %v285
    %v478 = vpack.c.b16 %v288, %v286
    %v479 = vpack.c.b16 %v291, %v289
    %v480 = vpack.c.b16 %v292, %v290
    %v481 = vpack.c.b16 %v295, %v293
    %v482 = vpack.c.b16 %v296, %v294
    %v483 = vpack.c.b16 %v299, %v297
    %v484 = vpack.c.b16 %v300, %v298
    %v485 = vpack.c.b16 %v303, %v301
    %v486 = vpack.c.b16 %v304, %v302
    %v487 = vpack.c.b16 %v307, %v305
    %v488 = vpack.c.b16 %v308, %v306
    %v489 = vpack.c.b16 %v311, %v309
    %v490 = vpack.c.b16 %v312, %v310
    %v491 = vpack.c.b16 %v315, %v313
    %v492 = vpack.c.b16 %v316, %v314
    %v493 = vpack.c.b16 %v319, %v317
    %v494 = vpack.c.b16 %v320, %v318
    %v495 = vpack.c.b16 %v323, %v321
    %v496 = vpack.c.b16 %v324, %v322
    %v497 = vpack.c.b16 %v327, %v325
    %v498 = vpack.c.b16 %v328, %v326
    %v499 = vpack.c.b16 %v331, %v329
    %v500 = vpack.c.b16 %v332, %v330
    %v501 = vpack.c.b16 %v335, %v333
    %v502 = vpack.c.b16 %v336, %v334
    %v503 = vpack.c.b16 %v339, %v337
    %v504 = vpack.c.b16 %v340, %v338
    %v505 = vpack.c.b16 %v343, %v341
    %v506 = vpack.c.b16 %v344, %v342
    %v507 = vpack.c.b16 %v347, %v345
    %v508 = vpack.c.b16 %v348, %v346
    %v509 = vpack.c.b16 %v351, %v349
    %v510 = vpack.c.b16 %v352, %v350
    %v511 = vpack.c.b16 %v355, %v353
    %v512 = vpack.c.b16 %v356, %v354
    %v513 = vpack.c.b16 %v359, %v357
    %v514 = vpack.c.b16 %v360, %v358
    %v515 = vpack.c.b16 %v363, %v361
    %v516 = vpack.c.b16 %v364, %v362
    %v517 = vpack.c.b16 %v367, %v365
    %v518 = vpack.c.b16 %v368, %v366
    %v519 = vpack.c.b16 %v371, %v369
    %v520 = vpack.c.b16 %v372, %v370
    %v521 = vpack.c.b16 %v375, %v373
    %v522 = vpack.c.b16 %v376, %v374
    %v523 = vpack.c.b16 %v379, %v377
    %v524 = vpack.c.b16 %v380, %v378
    %v525 = vpack.c.b16 %v383, %v381
    %v526 = vpack.c.b16 %v384, %v382
    %v527 = vpack.c.b16 %v387, %v385
    %v528 = vpack.c.b16 %v388, %v386
    %v529 = vpack.c.b16 %v391, %v389
    %v530 = vpack.c.b16 %v392, %v390
    %v531 = vpack.c.b16 %v395, %v393
    %v532 = vpack.c.b16 %v396, %v394
    %v533 = vpack.c.b16 %v399, %v397
    %v534 = vpack.c.b16 %v400, %v398
    %v535 = vpack.c.b16 %v403, %v401
    %v536 = vpack.c.b16 %v404, %v402
    %v537 = vpack.c.b16 %v407, %v405
    %v538 = vpack.c.b16 %v408, %v406
    %v539 = vpack.c.b16 %v411, %v409
    %v540 = vpack.c.b16 %v412, %v410
    %v541 = vpack.c.b16 %v415, %v413
    %v542 = vpack.c.b16 %v416, %v414
    %v543 = vpack.c.b16 %v419, %v417
    %v544 = vpack.c.b16 %v420, %v418
    %v545 = vpack.c.b16 %v423, %v421
    %v546 = vpack.c.b16 %v424, %v422
    %v547 = vpack.c.b16 %v427, %v425
    %v548 = vpack.c.b16 %v428, %v426
    %v549 = vpack.c.b16 %v431, %v429
    %v550 = vpack.c.b16 %v432, %v430
    %v551 = vpack.c.b16 %v435, %v433
    %v552 = vpack.c.b16 %v436, %v434
    %v553 = vpack.c.b16 %v439, %v437
    %v554 = vpack.c.b16 %v440, %v438
    %v555 = vpack.c.b16 %v443, %v441
    %v556 = vpack.c.b16 %v444, %v442
    %v557 = vpack.c.b16 %v447, %v445
    %v558 = vpack.c.b16 %v448, %v446
    %v559 = vpack.c.b16 %v451, %v449
    %v560 = vpack.c.b16 %v452, %v450
    %v561 = vpack.c.b16 %v455, %v453
    %v562 = vpack.c.b16 %v456, %v454
    %v563 = vpack.c.b16 %v459, %v457
    %v564 = vpack.c.b16 %v460, %v458
    %v565 = vpack.c.b16 %v463, %v461
    %v566 = vpack.c.b16 %v464, %v462
    %v567 = vpack.c.b16 %v467, %v465
    %v568 = vpack.c.b16 %v468, %v466
    %v569 = vpack.c.b16 %v471, %v469
    %v570 = vpack.c.b16 %v472, %v470
    %v571 = vpack.c.b16 %v475, %v473
    %v572 = vpack.c.b16 %v476, %v474
    %669 = vmatprep.subr.bf16.mxu0 %v492
    %670 = vmatpush1.bf16.msra.mxu0 %v491
    %671 = vmatprep.subr.bf16.mxu0 %v490
    %672 = vmatpush1.bf16.msra.mxu0 %v489
    %673 = vmatprep.subr.bf16.mxu0 %v488
    %674 = vmatpush1.bf16.msra.mxu0 %v487
    %675 = vmatprep.subr.bf16.mxu0 %v486
    %676 = vmatpush1.bf16.msra.mxu0 %v485
    %677 = vmatprep.subr.bf16.mxu0 %v484
    %678 = vmatpush1.bf16.msra.mxu0 %v483
    %679 = vmatprep.subr.bf16.mxu0 %v482
    %680 = vmatpush1.bf16.msra.mxu0 %v481
    %681 = vmatprep.subr.bf16.mxu0 %v480
    %682 = vmatpush1.bf16.msra.mxu0 %v479
    %683 = vmatprep.subr.bf16.mxu0 %v478
    %684 = vmatpush1.bf16.msra.mxu0 %v477
    %685 = vmatprep.subr.bf16.mxu0 %v508
    %686 = vmatpush2.bf16.msra.mxu0 %v507
    %687 = vmatprep.subr.bf16.mxu0 %v506
    %688 = vmatpush2.bf16.msra.mxu0 %v505
    %689 = vmatprep.subr.bf16.mxu0 %v504
    %690 = vmatpush2.bf16.msra.mxu0 %v503
    %691 = vmatprep.subr.bf16.mxu0 %v502
    %692 = vmatpush2.bf16.msra.mxu0 %v501
    %693 = vmatprep.subr.bf16.mxu0 %v500
    %694 = vmatpush2.bf16.msra.mxu0 %v499
    %695 = vmatprep.subr.bf16.mxu0 %v498
    %696 = vmatpush2.bf16.msra.mxu0 %v497
    %697 = vmatprep.subr.bf16.mxu0 %v496
    %698 = vmatpush2.bf16.msra.mxu0 %v495
    %699 = vmatprep.subr.bf16.mxu0 %v494
    %700 = vmatpush2.bf16.msra.mxu0 %v493
    %701 = vmatprep.mubr.bf16.mxu0 %v178
    %702 = vmatmul.mubr.bf16.gmra.mxu0 %v177
    %v703 = vpop.f32.mrf.mxu0
    %v704 = vadd.f32 0.0, %v703
    %v705 = vpop.f32.mrf.mxu0
    %v706 = vadd.f32 0.0, %v705
    %v707 = vpop.f32.mrf.mxu0
    %v708 = vadd.f32 0.0, %v707
    %v709 = vpop.f32.mrf.mxu0
    %v710 = vadd.f32 0.0, %v709
    %711 = vdwg.mxu0
    %712 = vmatprep.subr.bf16.mxu0 %v524
    %713 = vmatpush1.bf16.msra.mxu0 %v523
    %714 = vmatprep.subr.bf16.mxu0 %v522
    %715 = vmatpush1.bf16.msra.mxu0 %v521
    %716 = vmatprep.subr.bf16.mxu0 %v520
    %717 = vmatpush1.bf16.msra.mxu0 %v519
    %718 = vmatprep.subr.bf16.mxu0 %v518
    %719 = vmatpush1.bf16.msra.mxu0 %v517
    %720 = vmatprep.subr.bf16.mxu0 %v516
    %721 = vmatpush1.bf16.msra.mxu0 %v515
    %722 = vmatprep.subr.bf16.mxu0 %v514
    %723 = vmatpush1.bf16.msra.mxu0 %v513
    %724 = vmatprep.subr.bf16.mxu0 %v512
    %725 = vmatpush1.bf16.msra.mxu0 %v511
    %726 = vmatprep.subr.bf16.mxu0 %v510
    %727 = vmatpush1.bf16.msra.mxu0 %v509
    %728 = vmatprep.subr.bf16.mxu0 %v540
    %729 = vmatpush2.bf16.msra.mxu0 %v539
    %730 = vmatprep.subr.bf16.mxu0 %v538
    %731 = vmatpush2.bf16.msra.mxu0 %v537
    %732 = vmatprep.subr.bf16.mxu0 %v536
    %733 = vmatpush2.bf16.msra.mxu0 %v535
    %734 = vmatprep.subr.bf16.mxu0 %v534
    %735 = vmatpush2.bf16.msra.mxu0 %v533
    %736 = vmatprep.subr.bf16.mxu0 %v532
    %737 = vmatpush2.bf16.msra.mxu0 %v531
    %738 = vmatprep.subr.bf16.mxu0 %v530
    %739 = vmatpush2.bf16.msra.mxu0 %v529
    %740 = vmatprep.subr.bf16.mxu0 %v528
    %741 = vmatpush2.bf16.msra.mxu0 %v527
    %742 = vmatprep.subr.bf16.mxu0 %v526
    %743 = vmatpush2.bf16.msra.mxu0 %v525
    %744 = vmatprep.mubr.bf16.mxu0 %v180
    %745 = vmatmul.mubr.bf16.gmra.mxu0 %v179
    %v746 = vpop.f32.mrf.mxu0
    %v747 = vadd.f32 %v704, %v746
    %v748 = vpop.f32.mrf.mxu0
    %v749 = vadd.f32 %v706, %v748
    %v750 = vpop.f32.mrf.mxu0
    %v751 = vadd.f32 %v708, %v750
    %v752 = vpop.f32.mrf.mxu0
    %v753 = vadd.f32 %v710, %v752
    %754 = vdwg.mxu0
    %755 = vmatprep.subr.bf16.mxu0 %v556
    %756 = vmatpush1.bf16.msra.mxu0 %v555
    %757 = vmatprep.subr.bf16.mxu0 %v554
    %758 = vmatpush1.bf16.msra.mxu0 %v553
    %759 = vmatprep.subr.bf16.mxu0 %v552
    %760 = vmatpush1.bf16.msra.mxu0 %v551
    %761 = vmatprep.subr.bf16.mxu0 %v550
    %762 = vmatpush1.bf16.msra.mxu0 %v549
    %763 = vmatprep.subr.bf16.mxu0 %v548
    %764 = vmatpush1.bf16.msra.mxu0 %v547
    %765 = vmatprep.subr.bf16.mxu0 %v546
    %766 = vmatpush1.bf16.msra.mxu0 %v545
    %767 = vmatprep.subr.bf16.mxu0 %v544
    %768 = vmatpush1.bf16.msra.mxu0 %v543
    %769 = vmatprep.subr.bf16.mxu0 %v542
    %770 = vmatpush1.bf16.msra.mxu0 %v541
    %771 = vmatprep.subr.bf16.mxu0 %v572
    %772 = vmatpush2.bf16.msra.mxu0 %v571
    %773 = vmatprep.subr.bf16.mxu0 %v570
    %774 = vmatpush2.bf16.msra.mxu0 %v569
    %775 = vmatprep.subr.bf16.mxu0 %v568
    %776 = vmatpush2.bf16.msra.mxu0 %v567
    %777 = vmatprep.subr.bf16.mxu0 %v566
    %778 = vmatpush2.bf16.msra.mxu0 %v565
    %779 = vmatprep.subr.bf16.mxu0 %v564
    %780 = vmatpush2.bf16.msra.mxu0 %v563
    %781 = vmatprep.subr.bf16.mxu0 %v562
    %782 = vmatpush2.bf16.msra.mxu0 %v561
    %783 = vmatprep.subr.bf16.mxu0 %v560
    %784 = vmatpush2.bf16.msra.mxu0 %v559
    %785 = vmatprep.subr.bf16.mxu0 %v558
    %786 = vmatpush2.bf16.msra.mxu0 %v557
    %787 = vmatprep.mubr.bf16.mxu0 %v182
    %788 = vmatmul.mubr.bf16.gmra.mxu0 %v181
    %v789 = vpop.f32.mrf.mxu0
    %v790 = vadd.f32 %v747, %v789
    %v791 = vpop.f32.mrf.mxu0
    %v792 = vadd.f32 %v749, %v791
    %v793 = vpop.f32.mrf.mxu0
    %v794 = vadd.f32 %v751, %v793
    %v795 = vpop.f32.mrf.mxu0
    %v796 = vadd.f32 %v753, %v795
    %797 = vdwg.mxu0
    %v798 = vmax.f32 %v792, 0.0
    %v799 = vmax.f32 %v796, 0.0
    %v800 = vpack.c.bf16 %v799, %v798
    %v801 = vld [vmem:[#allocation7] sm:$0xf]
    %v802 = vld [vmem:[#allocation7 + $0x4] sm:$0xf]
    %v803 = vld [vmem:[#allocation7 + $0x8] sm:$0xf]
    %v804 = vld [vmem:[#allocation7 + $0xc] sm:$0xf]
    %v805 = vld [vmem:[#allocation7 + $0x10] sm:$0xf]
    %v806 = vld [vmem:[#allocation7 + $0x14] sm:$0xf]
    %v807 = vld [vmem:[#allocation7 + $0x18] sm:$0xf]
    %v808 = vld [vmem:[#allocation7 + $0x1c] sm:$0xf]
    %v809 = vld [vmem:[#allocation7 + $0x20] sm:$0xf]
    %v810 = vld [vmem:[#allocation7 + $0x24] sm:$0xf]
    %v811 = vld [vmem:[#allocation7 + $0x28] sm:$0xf]
    %v812 = vld [vmem:[#allocation7 + $0x2c] sm:$0xf]
    %v813 = vld [vmem:[#allocation7 + $0x30] sm:$0xf]
    %v814 = vld [vmem:[#allocation7 + $0x34] sm:$0xf]
    %v815 = vld [vmem:[#allocation7 + $0x38] sm:$0xf]
    %v816 = vld [vmem:[#allocation7 + $0x3c] sm:$0xf]
    %v833 = vunpack.c.l.b16 %v801
    %v834 = vunpack.c.l.b16 %v802
    %v835 = vunpack.c.l.b16 %v803
    %v836 = vunpack.c.l.b16 %v804
    %v837 = vunpack.c.l.b16 %v805
    %v838 = vunpack.c.l.b16 %v806
    %v839 = vunpack.c.l.b16 %v807
    %v840 = vunpack.c.l.b16 %v808
    %v841 = vunpack.c.l.b16 %v809
    %v842 = vunpack.c.l.b16 %v810
    %v843 = vunpack.c.l.b16 %v811
    %v844 = vunpack.c.l.b16 %v812
    %v845 = vunpack.c.l.b16 %v813
    %v846 = vunpack.c.l.b16 %v814
    %v847 = vunpack.c.l.b16 %v815
    %v848 = vunpack.c.l.b16 %v816
    %v849 = vpack.c.b16 %v834, %v833
    %v850 = vpack.c.b16 %v836, %v835
    %v851 = vpack.c.b16 %v838, %v837
    %v852 = vpack.c.b16 %v840, %v839
    %v853 = vpack.c.b16 %v842, %v841
    %v854 = vpack.c.b16 %v844, %v843
    %v855 = vpack.c.b16 %v846, %v845
    %v856 = vpack.c.b16 %v848, %v847
    %865 = vmatprep.subr.bf16.mxu0 0
    %866 = vmatpush1.bf16.msra.mxu0 %v856
    %867 = vmatprep.subr.bf16.mxu0 0
    %868 = vmatpush1.bf16.msra.mxu0 %v855
    %869 = vmatprep.subr.bf16.mxu0 0
    %870 = vmatpush1.bf16.msra.mxu0 %v854
    %871 = vmatprep.subr.bf16.mxu0 0
    %872 = vmatpush1.bf16.msra.mxu0 %v853
    %873 = vmatprep.subr.bf16.mxu0 0
    %874 = vmatpush1.bf16.msra.mxu0 %v852
    %875 = vmatprep.subr.bf16.mxu0 0
    %876 = vmatpush1.bf16.msra.mxu0 %v851
    %877 = vmatprep.subr.bf16.mxu0 0
    %878 = vmatpush1.bf16.msra.mxu0 %v850
    %879 = vmatprep.subr.bf16.mxu0 0
    %880 = vmatpush1.bf16.msra.mxu0 %v849
    %881 = vmatprep.subr.bf16.mxu0 0
    %882 = vmatpush2.bf16.msra.mxu0 0
    %883 = vmatprep.subr.bf16.mxu0 0
    %884 = vmatpush2.bf16.msra.mxu0 0
    %885 = vmatprep.subr.bf16.mxu0 0
    %886 = vmatpush2.bf16.msra.mxu0 0
    %887 = vmatprep.subr.bf16.mxu0 0
    %888 = vmatpush2.bf16.msra.mxu0 0
    %889 = vmatprep.subr.bf16.mxu0 0
    %890 = vmatpush2.bf16.msra.mxu0 0
    %891 = vmatprep.subr.bf16.mxu0 0
    %892 = vmatpush2.bf16.msra.mxu0 0
    %893 = vmatprep.subr.bf16.mxu0 0
    %894 = vmatpush2.bf16.msra.mxu0 0
    %895 = vmatprep.subr.bf16.mxu0 0
    %896 = vmatpush2.bf16.msra.mxu0 0
    %897 = vmatprep.mubr.bf16.mxu0 0
    %898 = vmatmul.mubr.bf16.gmra.mxu0 %v800
    %v899 = vpop.f32.mrf.mxu0
    %v900 = vadd.f32 0.0, %v899
    %v901 = vpop.f32.mrf.mxu0
    %v902 = vpop.f32.mrf.mxu0
    %v903 = vadd.f32 0.0, %v902
    %v904 = vpop.f32.mrf.mxu0
    %905 = vdwg.mxu0
    %v906 = vmax.f32 %v900, 0.0
    %v907 = vmax.f32 %v903, 0.0
    %v908 = vadd.f32 %v906, %v790
    %v909 = vadd.f32 %v907, %v794
    %910 = vst [vmem:[#allocation8] sm:$0xff] %v908
    %911 = vst [vmem:[#allocation8 + $0x8] sm:$0xff] %v909
    // Predicated region
    $region26: #{tpu_custom_call.1} parent=1 // pred_check
      _
    $region27: #{tpu_custom_call.1} parent=1 // pred_check_branch
      %913 = sbr.rel (0) target = $region29
    $region28: #{tpu_custom_call.1} parent=1 // pred_region
      %s915 = ssub.s32 256, 256
      %916 = vsyncadd [#allocation4], %s915
      %s917 = sshll.u32 [#allocation8], 4
      %s918 = int_to_ptr.vmem [resolvable:$true] %s917
      %923 = dma.vmem_to_hbm [thread:$0]  %s918, 256, %s3, [#allocation4], 128, 128, 8
    $region29: #{tpu_custom_call.1} parent=1 // pred_fallthru
      _
    // Predicated region
    $region30: #{tpu_custom_call.1} parent=1 // pred_check
      _
    $region31: #{tpu_custom_call.1} parent=1 // pred_check_branch
      %925 = sbr.rel (0) target = $region33
    $region32: #{tpu_custom_call.1} parent=1 // pred_region
      %926 = dma.done [#allocation4], 256
    $region33: #{tpu_custom_call.1} parent=1 // pred_fallthru
      _
    %927 = vsyncpa [#allocation3], 1
    %928 = vsyncpa [#allocation6], 1
    %929 = vsyncpa [#allocation4], 1

</llo_original>
